<compile_context>
chip_gen: v7x
topology: tpu7x:2x2x1
jax: 0.10.0
libtpu: 0.0.40
codegen_flags: <defaults>
</compile_context>

<pallas_src>
import functools

import jax
import jax.numpy as jnp
from jax.experimental import pallas as pl
from jax.experimental.pallas import tpu as pltpu


# ---------------------------------------------------------------------------
# Kernel
# ---------------------------------------------------------------------------
def _bmm_kernel(x_ref, y_ref, o_ref, acc_ref, *, acc_dtype):
    # x_ref: (Bt, tm, tk), y_ref: (Bt, tk, tn), o_ref: (Bt, tm, tn)
    k = pl.program_id(3)

    @pl.when(k == 0)
    def _zero():
        acc_ref[...] = jnp.zeros_like(acc_ref)

    # Batched MXU matmul; accumulate only into the scratch (never into o_ref mid-reduction).
    acc_ref[...] += jnp.einsum(
        "bmk,bkn->bmn",
        x_ref[...],
        y_ref[...],
        preferred_element_type=acc_dtype,
    )

    @pl.when(k == pl.num_programs(3) - 1)
    def _writeback():
        o_ref[...] = acc_ref[...].astype(o_ref.dtype)


# ---------------------------------------------------------------------------
# Tile-selection helpers (all static, evaluated at trace time)
# ---------------------------------------------------------------------------
def _pick_tile(dim, cap, align):
    """Largest tile <= cap that is a multiple of `align` and evenly divides `dim`;
    otherwise the full dim (always a legal block size)."""
    if dim <= cap:
        return dim
    t = (cap // align) * align
    while t >= align:
        if dim % t == 0:
            return t
        t -= align
    return dim


def _largest_divisor_leq(n, cap):
    cap = max(1, min(n, cap))
    for d in range(cap, 0, -1):
        if n % d == 0:
            return d
    return 1


# ---------------------------------------------------------------------------
# Wrapper with torch.matmul semantics
# ---------------------------------------------------------------------------
@jax.jit
def pallas_matmul(x, y):
    x = jnp.asarray(x)
    y = jnp.asarray(y)
    out_dtype = jnp.promote_types(x.dtype, y.dtype)

    x_was_1d = x.ndim == 1
    y_was_1d = y.ndim == 1
    if x_was_1d:
        x = x[None, :]  # (1, K)
    if y_was_1d:
        y = y[:, None]  # (K, 1)

    if x.shape[-1] != y.shape[-2]:
        raise ValueError(f"contraction dims must match: {x.shape} @ {y.shape}")

    M, K = x.shape[-2], x.shape[-1]
    N = y.shape[-1]
    batch_shape = jnp.broadcast_shapes(x.shape[:-2], y.shape[:-2])

    xb = jnp.broadcast_to(x, batch_shape + (M, K)).reshape(-1, M, K).astype(out_dtype)
    yb = jnp.broadcast_to(y, batch_shape + (K, N)).reshape(-1, K, N).astype(out_dtype)
    B = xb.shape[0]

    # Tile caps: conservative enough for v7x's 64 MiB VMEM, 128/256-aligned N/K for the MXU.
    itemsize = jnp.dtype(out_dtype).itemsize
    if itemsize <= 2:
        tm_cap, tn_cap, tk_cap = 512, 512, 1024
    else:
        tm_cap, tn_cap, tk_cap = 256, 256, 512

    tm = _pick_tile(M, tm_cap, 8)
    tn = _pick_tile(N, tn_cap, 128)
    tk = _pick_tile(K, tk_cap, 128)

    # Pack multiple small batch matmuls per grid step (~2 MiB working-set target)
    # to amortize the per-grid-step overhead and fill DMA bursts.
    per_block_bytes = (tm * tk + tk * tn) * itemsize + tm * tn * max(itemsize, 4)
    bt_cap = max(1, min(512, (2 * 1024 * 1024) // max(per_block_bytes, 1)))
    bt = _largest_divisor_leq(B, bt_cap)

    acc_dtype = jnp.int32 if jnp.issubdtype(out_dtype, jnp.integer) else jnp.float32
    # TODO(synk): v7x MXU has no integer matmul path; integer inputs take a slow path there.

    grid = (B // bt, M // tm, N // tn, K // tk)
    kernel = functools.partial(_bmm_kernel, acc_dtype=acc_dtype)

    out = pl.pallas_call(
        kernel,
        out_shape=jax.ShapeDtypeStruct((B, M, N), out_dtype),
        grid_spec=pltpu.PrefetchScalarGridSpec(
            num_scalar_prefetch=0,
            grid=grid,
            in_specs=[
                pl.BlockSpec((bt, tm, tk), lambda b, i, j, k: (b, i, k)),
                pl.BlockSpec((bt, tk, tn), lambda b, i, j, k: (b, k, j)),
            ],
            out_specs=pl.BlockSpec((bt, tm, tn), lambda b, i, j, k: (b, i, j)),
            scratch_shapes=[pltpu.VMEM((bt, tm, tn), acc_dtype)],
        ),
        compiler_params=pltpu.CompilerParams(
            dimension_semantics=("parallel", "parallel", "parallel", "arbitrary"),
            vmem_limit_bytes=32 * 1024 * 1024,
        ),
    )(xb, yb)

    out = out.reshape(batch_shape + (M, N))
    if x_was_1d and y_was_1d:
        out = out[..., 0, 0]
    elif x_was_1d:
        out = out[..., 0, :]
    elif y_was_1d:
        out = out[..., :, 0]
    return out


if __name__ == "__main__":
    key = jax.random.PRNGKey(0)
    k1, k2, k3, k4, k5 = jax.random.split(key, 5)

    # 1) Attention-style batched matmul: (batch=2, heads=4, seq=16, head_dim=32).
    x1 = jax.random.normal(k1, (2, 4, 16, 32), dtype=jnp.float32)
    y1 = jax.random.normal(k2, (2, 4, 32, 16), dtype=jnp.float32)
    o1 = jax.block_until_ready(pallas_matmul(x1, y1))
    r1 = jnp.matmul(x1, y1)
    assert o1.shape == r1.shape == (2, 4, 16, 16)
    assert jnp.allclose(o1, r1, atol=1e-3, rtol=1e-3)

    # 2) Plain 2-D matmul large enough to exercise K-tiling (two reduction steps).
    x2 = jax.random.normal(k3, (8, 1024), dtype=jnp.float32)
    y2 = jax.random.normal(k4, (1024, 256), dtype=jnp.float32)
    o2 = jax.block_until_ready(pallas_matmul(x2, y2))
    r2 = jnp.matmul(x2, y2)
    rel_err = jnp.linalg.norm(o2 - r2) / jnp.linalg.norm(r2)
    assert o2.shape == r2.shape == (8, 256)
    assert float(rel_err) < 1e-2

    # 3) torch.matmul-style broadcasting of batch dims.
    y3 = jax.random.normal(k5, (32, 16), dtype=jnp.float32)
    o3 = jax.block_until_ready(pallas_matmul(x1, y3))
    r3 = jnp.matmul(x1, y3)
    assert o3.shape == r3.shape == (2, 4, 16, 16)
    assert jnp.allclose(o3, r3, atol=1e-3, rtol=1e-3)

    print("KERNEL_OK")
</pallas_src>

<mosaic_0001>
module attributes {stable_mosaic.version = 11 : i64} {
  func.func @_bmm_kernel(%arg0: i32, %arg1: i32, %arg2: i32, %arg3: i32, %arg4: memref<8x16x32xf32, #tpu.memory_space<vmem>>, %arg5: memref<8x32x16xf32, #tpu.memory_space<vmem>>, %arg6: memref<8x16x16xf32, #tpu.memory_space<vmem>>, %arg7: memref<8x16x16xf32, #tpu.memory_space<vmem>>) attributes {dimension_semantics = [#tpu.dimension_semantics<parallel>, #tpu.dimension_semantics<parallel>, #tpu.dimension_semantics<parallel>, #tpu.dimension_semantics<arbitrary>], iteration_bounds = array<i64: 1, 1, 1, 1>, scalar_prefetch = 0 : i64, scratch_operands = 1 : i64, tpu.core_type = #tpu.core_type<tc>, window_params = [{transform_indices = @transform_0, window_bounds = array<i64: 8, 16, 32>}, {transform_indices = @transform_1, window_bounds = array<i64: 8, 32, 16>}, {transform_indices = @transform_2, window_bounds = array<i64: 8, 16, 16>}]} {
    %c0_i32 = arith.constant 0 : i32
    %0 = arith.cmpi eq, %arg3, %c0_i32 : i32
    %1 = arith.extui %0 : i1 to i32
    %c0_i32_0 = arith.constant 0 : i32
    %2 = arith.cmpi ne, %1, %c0_i32_0 : i32
    scf.if %2 {
      %cst_14 = arith.constant 0.000000e+00 : f32
      %12 = vector.broadcast %cst_14 : f32 to vector<8x16x16xf32>
      %c0_15 = arith.constant 0 : index
      %c0_16 = arith.constant 0 : index
      %c0_17 = arith.constant 0 : index
      %13 = vector.load %arg7[%c0_15, %c0_16, %c0_17] : memref<8x16x16xf32, #tpu.memory_space<vmem>>, vector<8x16x16xf32>
      tpu.vector_store %arg7[%c0_15, %c0_16, %c0_17], %12 {strides = array<i32>} : memref<8x16x16xf32, #tpu.memory_space<vmem>>, vector<8x16x16xf32>,
    } else {
    }
    %c0 = arith.constant 0 : index
    %c0_1 = arith.constant 0 : index
    %c0_2 = arith.constant 0 : index
    %3 = vector.load %arg7[%c0, %c0_1, %c0_2] : memref<8x16x16xf32, #tpu.memory_space<vmem>>, vector<8x16x16xf32>
    %c0_3 = arith.constant 0 : index
    %c0_4 = arith.constant 0 : index
    %c0_5 = arith.constant 0 : index
    %4 = vector.load %arg4[%c0_3, %c0_4, %c0_5] : memref<8x16x32xf32, #tpu.memory_space<vmem>>, vector<8x16x32xf32>
    %c0_6 = arith.constant 0 : index
    %c0_7 = arith.constant 0 : index
    %c0_8 = arith.constant 0 : index
    %5 = vector.load %arg5[%c0_6, %c0_7, %c0_8] : memref<8x32x16xf32, #tpu.memory_space<vmem>>, vector<8x32x16xf32>
    "tpu.trace_start"() <{level = 10 : i32, message = "bmk,bkn->bmn"}> : () -> ()
    %cst = arith.constant dense<0.000000e+00> : vector<8x16x16xf32>
    %6 = tpu.matmul %4, %5, %cst {dimension_numbers = #tpu.dot_dimension_numbers<[2], [1], [1], [2], [0, 0, 0, 1, 1, 2], [0], [0]>} : vector<8x16x32xf32>, vector<8x32x16xf32>, vector<8x16x16xf32> -> vector<8x16x16xf32>
    "tpu.trace_stop"() : () -> ()
    %7 = arith.addf %3, %6 : vector<8x16x16xf32>
    %c0_9 = arith.constant 0 : index
    %c0_10 = arith.constant 0 : index
    %c0_11 = arith.constant 0 : index
    %8 = vector.load %arg7[%c0_9, %c0_10, %c0_11] : memref<8x16x16xf32, #tpu.memory_space<vmem>>, vector<8x16x16xf32>
    tpu.vector_store %arg7[%c0_9, %c0_10, %c0_11], %7 {strides = array<i32>} : memref<8x16x16xf32, #tpu.memory_space<vmem>>, vector<8x16x16xf32>,
    %c0_i32_12 = arith.constant 0 : i32
    %9 = arith.cmpi eq, %arg3, %c0_i32_12 : i32
    %10 = arith.extui %9 : i1 to i32
    %c0_i32_13 = arith.constant 0 : i32
    %11 = arith.cmpi ne, %10, %c0_i32_13 : i32
    scf.if %11 {
      %c0_14 = arith.constant 0 : index
      %c0_15 = arith.constant 0 : index
      %c0_16 = arith.constant 0 : index
      %12 = vector.load %arg7[%c0_14, %c0_15, %c0_16] : memref<8x16x16xf32, #tpu.memory_space<vmem>>, vector<8x16x16xf32>
      %c0_17 = arith.constant 0 : index
      %c0_18 = arith.constant 0 : index
      %c0_19 = arith.constant 0 : index
      %13 = vector.load %arg6[%c0_17, %c0_18, %c0_19] : memref<8x16x16xf32, #tpu.memory_space<vmem>>, vector<8x16x16xf32>
      tpu.vector_store %arg6[%c0_17, %c0_18, %c0_19], %12 {strides = array<i32>} : memref<8x16x16xf32, #tpu.memory_space<vmem>>, vector<8x16x16xf32>,
    } else {
    }
    return
  }
  func.func @transform_0(%arg0: i32, %arg1: i32, %arg2: i32, %arg3: i32) -> (i32, i32, i32) {
    %c0_i32 = arith.constant 0 : i32
    return %arg0, %arg1, %arg3 : i32, i32, i32
  }
  func.func @transform_1(%arg0: i32, %arg1: i32, %arg2: i32, %arg3: i32) -> (i32, i32, i32) {
    %c0_i32 = arith.constant 0 : i32
    return %arg0, %arg3, %arg2 : i32, i32, i32
  }
  func.func @transform_2(%arg0: i32, %arg1: i32, %arg2: i32, %arg3: i32) -> (i32, i32, i32) {
    %c0_i32 = arith.constant 0 : i32
    return %arg0, %arg1, %arg2 : i32, i32, i32
  }
}

</mosaic_0001>

<llo_original>
// kernel: pallas_matmul.1
$region0: #{pallas_matmul.1}
  #allocation0 [shape = 'u32[]', space=smem, size = 0x4, offset = 0x4, fixed_abs, tag = 'smem constant byte address 0x4 - core index']
  #allocation1 [shape = 'u32[144,128]{1,0:T(1,128)}', space=vmem, size = 0x12000, scoped, tag = 'internal scratch']
  #allocation2 [shape = 'f32[8,16,16]{2,1,0:T(8,128)}', space=vmem, size = 0x10000, scoped, tag = 'scratch operand']
  %s0 = inlined_call_operand.vmem [shape: f32[8,16,32], index: 0, kind: input, shape index: {}]
  %s1 = inlined_call_operand.vmem [shape: f32[8,32,16], index: 1, kind: input, shape index: {}]
  %s2 = inlined_call_operand.hbm [shape: f32[8,16,16], index: 2, kind: output, shape index: {}]
  %s3 = sld [smem:[#allocation0]]
  $region26: #{pallas_matmul.1} parent=0
    _
  %s5 = ssub.s32 1, %s3
  %s6 = scalar_select 0, %s5, %s3
  $region1: #{pallas_matmul.1} parent=0
    #allocation3 [shape = 'u8[65536]{0}', space=vmem, size = 0x10000, scoped, tag = 'output window, operand 0, single buffered']
    #allocation4 [shape = 's32[1]{0}', space=sflag, size = 0x4, scoped, tag = 'scoped memory for pallas_matmul.1']
    %7 = vsyncpa [#allocation4], 0
    // Predicated region
    $region2: #{pallas_matmul.1} parent=1 // pred_check
      _
    $region3: #{pallas_matmul.1} parent=1 // pred_check_branch
      %9 = sbr.rel (0) target = $region5
    $region4: #{pallas_matmul.1} parent=1 // pred_region
      _
    $region5: #{pallas_matmul.1} parent=1 // pred_fallthru
      _
    // Predicated region
    $region6: #{pallas_matmul.1} parent=1 // pred_check
      _
    $region7: #{pallas_matmul.1} parent=1 // pred_check_branch
      %11 = sbr.rel (0) target = $region9
    $region8: #{pallas_matmul.1} parent=1 // pred_region
      _
    $region9: #{pallas_matmul.1} parent=1 // pred_fallthru
      _
    %p12 = scmp.eq.s32.totalorder 0, 0
    // Predicated region
    $region10: #{pallas_matmul.1} parent=1 // pred_check
      %p13 = pneg %p12
    $region11: #{pallas_matmul.1} parent=1 // pred_check_branch
      %15 = sbr.rel (%p13) target = $region13
    $region12: #{pallas_matmul.1} parent=1 // pred_region
      %vm16 = vcmask 130048
      %17 = vst.msk [vmem:[#allocation2] sm:$0xff] %vm16, 0.0
      %18 = vst.msk [vmem:[#allocation2 + $0x8] sm:$0xff] %vm16, 0.0
      %19 = vst.msk [vmem:[#allocation2 + $0x10] sm:$0xff] %vm16, 0.0
      %20 = vst.msk [vmem:[#allocation2 + $0x18] sm:$0xff] %vm16, 0.0
      %21 = vst.msk [vmem:[#allocation2 + $0x20] sm:$0xff] %vm16, 0.0
      %22 = vst.msk [vmem:[#allocation2 + $0x28] sm:$0xff] %vm16, 0.0
      %23 = vst.msk [vmem:[#allocation2 + $0x30] sm:$0xff] %vm16, 0.0
      %24 = vst.msk [vmem:[#allocation2 + $0x38] sm:$0xff] %vm16, 0.0
      %25 = vst.msk [vmem:[#allocation2 + $0x40] sm:$0xff] %vm16, 0.0
      %26 = vst.msk [vmem:[#allocation2 + $0x48] sm:$0xff] %vm16, 0.0
      %27 = vst.msk [vmem:[#allocation2 + $0x50] sm:$0xff] %vm16, 0.0
      %28 = vst.msk [vmem:[#allocation2 + $0x58] sm:$0xff] %vm16, 0.0
      %29 = vst.msk [vmem:[#allocation2 + $0x60] sm:$0xff] %vm16, 0.0
      %30 = vst.msk [vmem:[#allocation2 + $0x68] sm:$0xff] %vm16, 0.0
      %31 = vst.msk [vmem:[#allocation2 + $0x70] sm:$0xff] %vm16, 0.0
      %32 = vst.msk [vmem:[#allocation2 + $0x78] sm:$0xff] %vm16, 0.0
    $region13: #{pallas_matmul.1} parent=1 // pred_fallthru
      _
    %v33 = vld [vmem:[#allocation2] sm:$0xff]
    %v34 = vld [vmem:[#allocation2 + $0x8] sm:$0xff]
    %v35 = vld [vmem:[#allocation2 + $0x10] sm:$0xff]
    %v36 = vld [vmem:[#allocation2 + $0x18] sm:$0xff]
    %v37 = vld [vmem:[#allocation2 + $0x20] sm:$0xff]
    %v38 = vld [vmem:[#allocation2 + $0x28] sm:$0xff]
    %v39 = vld [vmem:[#allocation2 + $0x30] sm:$0xff]
    %v40 = vld [vmem:[#allocation2 + $0x38] sm:$0xff]
    %v41 = vld [vmem:[#allocation2 + $0x40] sm:$0xff]
    %v42 = vld [vmem:[#allocation2 + $0x48] sm:$0xff]
    %v43 = vld [vmem:[#allocation2 + $0x50] sm:$0xff]
    %v44 = vld [vmem:[#allocation2 + $0x58] sm:$0xff]
    %v45 = vld [vmem:[#allocation2 + $0x60] sm:$0xff]
    %v46 = vld [vmem:[#allocation2 + $0x68] sm:$0xff]
    %v47 = vld [vmem:[#allocation2 + $0x70] sm:$0xff]
    %v48 = vld [vmem:[#allocation2 + $0x78] sm:$0xff]
    %v49 = vld [vmem:[%s0] sm:$0xff]
    %v50 = vld [vmem:[%s0 + $0x8] sm:$0xff]
    %v51 = vld [vmem:[%s0 + $0x10] sm:$0xff]
    %v52 = vld [vmem:[%s0 + $0x18] sm:$0xff]
    %v53 = vld [vmem:[%s0 + $0x20] sm:$0xff]
    %v54 = vld [vmem:[%s0 + $0x28] sm:$0xff]
    %v55 = vld [vmem:[%s0 + $0x30] sm:$0xff]
    %v56 = vld [vmem:[%s0 + $0x38] sm:$0xff]
    %v57 = vld [vmem:[%s0 + $0x40] sm:$0xff]
    %v58 = vld [vmem:[%s0 + $0x48] sm:$0xff]
    %v59 = vld [vmem:[%s0 + $0x50] sm:$0xff]
    %v60 = vld [vmem:[%s0 + $0x58] sm:$0xff]
    %v61 = vld [vmem:[%s0 + $0x60] sm:$0xff]
    %v62 = vld [vmem:[%s0 + $0x68] sm:$0xff]
    %v63 = vld [vmem:[%s0 + $0x70] sm:$0xff]
    %v64 = vld [vmem:[%s0 + $0x78] sm:$0xff]
    %v65 = vld [vmem:[%s1] sm:$0xff]
    %v66 = vld [vmem:[%s1 + $0x8] sm:$0xff]
    %v67 = vld [vmem:[%s1 + $0x10] sm:$0xff]
    %v68 = vld [vmem:[%s1 + $0x18] sm:$0xff]
    %v69 = vld [vmem:[%s1 + $0x20] sm:$0xff]
    %v70 = vld [vmem:[%s1 + $0x28] sm:$0xff]
    %v71 = vld [vmem:[%s1 + $0x30] sm:$0xff]
    %v72 = vld [vmem:[%s1 + $0x38] sm:$0xff]
    %v73 = vld [vmem:[%s1 + $0x40] sm:$0xff]
    %v74 = vld [vmem:[%s1 + $0x48] sm:$0xff]
    %v75 = vld [vmem:[%s1 + $0x50] sm:$0xff]
    %v76 = vld [vmem:[%s1 + $0x58] sm:$0xff]
    %v77 = vld [vmem:[%s1 + $0x60] sm:$0xff]
    %v78 = vld [vmem:[%s1 + $0x68] sm:$0xff]
    %v79 = vld [vmem:[%s1 + $0x70] sm:$0xff]
    %v80 = vld [vmem:[%s1 + $0x78] sm:$0xff]
    %v81 = vld [vmem:[%s1 + $0x80] sm:$0xff]
    %v82 = vld [vmem:[%s1 + $0x88] sm:$0xff]
    %v83 = vld [vmem:[%s1 + $0x90] sm:$0xff]
    %v84 = vld [vmem:[%s1 + $0x98] sm:$0xff]
    %v85 = vld [vmem:[%s1 + $0xa0] sm:$0xff]
    %v86 = vld [vmem:[%s1 + $0xa8] sm:$0xff]
    %v87 = vld [vmem:[%s1 + $0xb0] sm:$0xff]
    %v88 = vld [vmem:[%s1 + $0xb8] sm:$0xff]
    %v89 = vld [vmem:[%s1 + $0xc0] sm:$0xff]
    %v90 = vld [vmem:[%s1 + $0xc8] sm:$0xff]
    %v91 = vld [vmem:[%s1 + $0xd0] sm:$0xff]
    %v92 = vld [vmem:[%s1 + $0xd8] sm:$0xff]
    %v93 = vld [vmem:[%s1 + $0xe0] sm:$0xff]
    %v94 = vld [vmem:[%s1 + $0xe8] sm:$0xff]
    %v95 = vld [vmem:[%s1 + $0xf0] sm:$0xff]
    %v96 = vld [vmem:[%s1 + $0xf8] sm:$0xff]
    %vm97 = vcmask 261120
    %v99 = vsel %vm97, %v49, 0
    %v102 = vsel %vm97, %v50, 0
    %104 = vmatprep.subr.mxu0 0.0
    %105 = vmatpush1.msra.mxu0 %v65
    %106 = vmatprep.subr.mxu0 0.0
    %107 = vmatpush1.msra.mxu0 %v66
    %108 = vmatprep.subr.mxu0 0.0
    %109 = vmatpush1.msra.mxu0 %v67
    %110 = vmatprep.subr.mxu0 0.0
    %111 = vmatpush1.msra.mxu0 %v68
    %112 = vmatprep.subr.mxu0 0.0
    %113 = vmatpush1.msra.mxu0 0.0
    %114 = vmatprep.subr.mxu0 0.0
    %115 = vmatpush1.msra.mxu0 0.0
    %116 = vmatprep.subr.mxu0 0.0
    %117 = vmatpush1.msra.mxu0 0.0
    %118 = vmatprep.subr.mxu0 0.0
    %119 = vmatpush1.msra.mxu0 0.0
    %120 = vmatprep.subr.mxu0 0.0
    %121 = vmatpush1.msra.mxu0 0.0
    %122 = vmatprep.subr.mxu0 0.0
    %123 = vmatpush1.msra.mxu0 0.0
    %124 = vmatprep.subr.mxu0 0.0
    %125 = vmatpush1.msra.mxu0 0.0
    %126 = vmatprep.subr.mxu0 0.0
    %127 = vmatpush1.msra.mxu0 0.0
    %128 = vmatprep.subr.mxu0 0.0
    %129 = vmatpush1.msra.mxu0 0.0
    %130 = vmatprep.subr.mxu0 0.0
    %131 = vmatpush1.msra.mxu0 0.0
    %132 = vmatprep.subr.mxu0 0.0
    %133 = vmatpush1.msra.mxu0 0.0
    %134 = vmatprep.subr.mxu0 0.0
    %135 = vmatpush1.msra.mxu0 0.0
    %136 = vmatprep.subr.mxu0 0.0
    %137 = vmatpush1.msra.mxu0 0.0
    %138 = vmatprep.subr.mxu0 0.0
    %139 = vmatpush1.msra.mxu0 0.0
    %140 = vmatprep.subr.mxu0 0.0
    %141 = vmatpush1.msra.mxu0 0.0
    %142 = vmatprep.subr.mxu0 0.0
    %143 = vmatpush1.msra.mxu0 0.0
    %144 = vmatprep.subr.mxu0 0.0
    %145 = vmatpush1.msra.mxu0 0.0
    %146 = vmatprep.subr.mxu0 0.0
    %147 = vmatpush1.msra.mxu0 0.0
    %148 = vmatprep.subr.mxu0 0.0
    %149 = vmatpush1.msra.mxu0 0.0
    %150 = vmatprep.subr.mxu0 0.0
    %151 = vmatpush1.msra.mxu0 0.0
    %152 = vmatprep.subr.mxu0 0.0
    %153 = vmatpush1.msra.mxu0 0.0
    %154 = vmatprep.subr.mxu0 0.0
    %155 = vmatpush1.msra.mxu0 0.0
    %156 = vmatprep.subr.mxu0 0.0
    %157 = vmatpush1.msra.mxu0 0.0
    %158 = vmatprep.subr.mxu0 0.0
    %159 = vmatpush1.msra.mxu0 0.0
    %160 = vmatprep.subr.mxu0 0.0
    %161 = vmatpush1.msra.mxu0 0.0
    %162 = vmatprep.subr.mxu0 0.0
    %163 = vmatpush1.msra.mxu0 0.0
    %164 = vmatprep.subr.mxu0 0.0
    %165 = vmatpush1.msra.mxu0 0.0
    %166 = vmatprep.subr.mxu0 0.0
    %167 = vmatpush1.msra.mxu0 0.0
    %168 = vmatprep.mubr.f32.mxu0 0.0
    %169 = vmatmul.mubr.f32.gmra.mrb[0].mxu0 %v99
    %v170 = vpop.f32.mrb[0].mxu0
    %v171 = vadd.f32 0.0, %v170
    %v172 = vpop.f32.mrb[0].mxu0
    %173 = vmatprep.mubr.f32.mxu0 0.0
    %174 = vmatmul.mubr.f32.gmra.mrb[0].mxu0 %v102
    %v175 = vpop.f32.mrb[0].mxu0
    %v176 = vadd.f32 0.0, %v175
    %v177 = vpop.f32.mrb[0].mxu0
    %178 = vdwg.mxu0
    %v180 = vsel %vm97, %v51, 0
    %v183 = vsel %vm97, %v52, 0
    %185 = vmatprep.subr.mxu0 0.0
    %186 = vmatpush1.msra.mxu0 %v69
    %187 = vmatprep.subr.mxu0 0.0
    %188 = vmatpush1.msra.mxu0 %v70
    %189 = vmatprep.subr.mxu0 0.0
    %190 = vmatpush1.msra.mxu0 %v71
    %191 = vmatprep.subr.mxu0 0.0
    %192 = vmatpush1.msra.mxu0 %v72
    %193 = vmatprep.subr.mxu0 0.0
    %194 = vmatpush1.msra.mxu0 0.0
    %195 = vmatprep.subr.mxu0 0.0
    %196 = vmatpush1.msra.mxu0 0.0
    %197 = vmatprep.subr.mxu0 0.0
    %198 = vmatpush1.msra.mxu0 0.0
    %199 = vmatprep.subr.mxu0 0.0
    %200 = vmatpush1.msra.mxu0 0.0
    %201 = vmatprep.subr.mxu0 0.0
    %202 = vmatpush1.msra.mxu0 0.0
    %203 = vmatprep.subr.mxu0 0.0
    %204 = vmatpush1.msra.mxu0 0.0
    %205 = vmatprep.subr.mxu0 0.0
    %206 = vmatpush1.msra.mxu0 0.0
    %207 = vmatprep.subr.mxu0 0.0
    %208 = vmatpush1.msra.mxu0 0.0
    %209 = vmatprep.subr.mxu0 0.0
    %210 = vmatpush1.msra.mxu0 0.0
    %211 = vmatprep.subr.mxu0 0.0
    %212 = vmatpush1.msra.mxu0 0.0
    %213 = vmatprep.subr.mxu0 0.0
    %214 = vmatpush1.msra.mxu0 0.0
    %215 = vmatprep.subr.mxu0 0.0
    %216 = vmatpush1.msra.mxu0 0.0
    %217 = vmatprep.subr.mxu0 0.0
    %218 = vmatpush1.msra.mxu0 0.0
    %219 = vmatprep.subr.mxu0 0.0
    %220 = vmatpush1.msra.mxu0 0.0
    %221 = vmatprep.subr.mxu0 0.0
    %222 = vmatpush1.msra.mxu0 0.0
    %223 = vmatprep.subr.mxu0 0.0
    %224 = vmatpush1.msra.mxu0 0.0
    %225 = vmatprep.subr.mxu0 0.0
    %226 = vmatpush1.msra.mxu0 0.0
    %227 = vmatprep.subr.mxu0 0.0
    %228 = vmatpush1.msra.mxu0 0.0
    %229 = vmatprep.subr.mxu0 0.0
    %230 = vmatpush1.msra.mxu0 0.0
    %231 = vmatprep.subr.mxu0 0.0
    %232 = vmatpush1.msra.mxu0 0.0
    %233 = vmatprep.subr.mxu0 0.0
    %234 = vmatpush1.msra.mxu0 0.0
    %235 = vmatprep.subr.mxu0 0.0
    %236 = vmatpush1.msra.mxu0 0.0
    %237 = vmatprep.subr.mxu0 0.0
    %238 = vmatpush1.msra.mxu0 0.0
    %239 = vmatprep.subr.mxu0 0.0
    %240 = vmatpush1.msra.mxu0 0.0
    %241 = vmatprep.subr.mxu0 0.0
    %242 = vmatpush1.msra.mxu0 0.0
    %243 = vmatprep.subr.mxu0 0.0
    %244 = vmatpush1.msra.mxu0 0.0
    %245 = vmatprep.subr.mxu0 0.0
    %246 = vmatpush1.msra.mxu0 0.0
    %247 = vmatprep.subr.mxu0 0.0
    %248 = vmatpush1.msra.mxu0 0.0
    %249 = vmatprep.mubr.f32.mxu0 0.0
    %250 = vmatmul.mubr.f32.gmra.mrb[0].mxu0 %v180
    %v251 = vpop.f32.mrb[0].mxu0
    %v252 = vadd.f32 0.0, %v251
    %v253 = vpop.f32.mrb[0].mxu0
    %254 = vmatprep.mubr.f32.mxu0 0.0
    %255 = vmatmul.mubr.f32.gmra.mrb[0].mxu0 %v183
    %v256 = vpop.f32.mrb[0].mxu0
    %v257 = vadd.f32 0.0, %v256
    %v258 = vpop.f32.mrb[0].mxu0
    %259 = vdwg.mxu0
    %v261 = vsel %vm97, %v53, 0
    %v264 = vsel %vm97, %v54, 0
    %266 = vmatprep.subr.mxu0 0.0
    %267 = vmatpush1.msra.mxu0 %v73
    %268 = vmatprep.subr.mxu0 0.0
    %269 = vmatpush1.msra.mxu0 %v74
    %270 = vmatprep.subr.mxu0 0.0
    %271 = vmatpush1.msra.mxu0 %v75
    %272 = vmatprep.subr.mxu0 0.0
    %273 = vmatpush1.msra.mxu0 %v76
    %274 = vmatprep.subr.mxu0 0.0
    %275 = vmatpush1.msra.mxu0 0.0
    %276 = vmatprep.subr.mxu0 0.0
    %277 = vmatpush1.msra.mxu0 0.0
    %278 = vmatprep.subr.mxu0 0.0
    %279 = vmatpush1.msra.mxu0 0.0
    %280 = vmatprep.subr.mxu0 0.0
    %281 = vmatpush1.msra.mxu0 0.0
    %282 = vmatprep.subr.mxu0 0.0
    %283 = vmatpush1.msra.mxu0 0.0
    %284 = vmatprep.subr.mxu0 0.0
    %285 = vmatpush1.msra.mxu0 0.0
    %286 = vmatprep.subr.mxu0 0.0
    %287 = vmatpush1.msra.mxu0 0.0
    %288 = vmatprep.subr.mxu0 0.0
    %289 = vmatpush1.msra.mxu0 0.0
    %290 = vmatprep.subr.mxu0 0.0
    %291 = vmatpush1.msra.mxu0 0.0
    %292 = vmatprep.subr.mxu0 0.0
    %293 = vmatpush1.msra.mxu0 0.0
    %294 = vmatprep.subr.mxu0 0.0
    %295 = vmatpush1.msra.mxu0 0.0
    %296 = vmatprep.subr.mxu0 0.0
    %297 = vmatpush1.msra.mxu0 0.0
    %298 = vmatprep.subr.mxu0 0.0
    %299 = vmatpush1.msra.mxu0 0.0
    %300 = vmatprep.subr.mxu0 0.0
    %301 = vmatpush1.msra.mxu0 0.0
    %302 = vmatprep.subr.mxu0 0.0
    %303 = vmatpush1.msra.mxu0 0.0
    %304 = vmatprep.subr.mxu0 0.0
    %305 = vmatpush1.msra.mxu0 0.0
    %306 = vmatprep.subr.mxu0 0.0
    %307 = vmatpush1.msra.mxu0 0.0
    %308 = vmatprep.subr.mxu0 0.0
    %309 = vmatpush1.msra.mxu0 0.0
    %310 = vmatprep.subr.mxu0 0.0
    %311 = vmatpush1.msra.mxu0 0.0
    %312 = vmatprep.subr.mxu0 0.0
    %313 = vmatpush1.msra.mxu0 0.0
    %314 = vmatprep.subr.mxu0 0.0
    %315 = vmatpush1.msra.mxu0 0.0
    %316 = vmatprep.subr.mxu0 0.0
    %317 = vmatpush1.msra.mxu0 0.0
    %318 = vmatprep.subr.mxu0 0.0
    %319 = vmatpush1.msra.mxu0 0.0
    %320 = vmatprep.subr.mxu0 0.0
    %321 = vmatpush1.msra.mxu0 0.0
    %322 = vmatprep.subr.mxu0 0.0
    %323 = vmatpush1.msra.mxu0 0.0
    %324 = vmatprep.subr.mxu0 0.0
    %325 = vmatpush1.msra.mxu0 0.0
    %326 = vmatprep.subr.mxu0 0.0
    %327 = vmatpush1.msra.mxu0 0.0
    %328 = vmatprep.subr.mxu0 0.0
    %329 = vmatpush1.msra.mxu0 0.0
    %330 = vmatprep.mubr.f32.mxu0 0.0
    %331 = vmatmul.mubr.f32.gmra.mrb[0].mxu0 %v261
    %v332 = vpop.f32.mrb[0].mxu0
    %v333 = vadd.f32 0.0, %v332
    %v334 = vpop.f32.mrb[0].mxu0
    %335 = vmatprep.mubr.f32.mxu0 0.0
    %336 = vmatmul.mubr.f32.gmra.mrb[0].mxu0 %v264
    %v337 = vpop.f32.mrb[0].mxu0
    %v338 = vadd.f32 0.0, %v337
    %v339 = vpop.f32.mrb[0].mxu0
    %340 = vdwg.mxu0
    %v342 = vsel %vm97, %v55, 0
    %v345 = vsel %vm97, %v56, 0
    %347 = vmatprep.subr.mxu0 0.0
    %348 = vmatpush1.msra.mxu0 %v77
    %349 = vmatprep.subr.mxu0 0.0
    %350 = vmatpush1.msra.mxu0 %v78
    %351 = vmatprep.subr.mxu0 0.0
    %352 = vmatpush1.msra.mxu0 %v79
    %353 = vmatprep.subr.mxu0 0.0
    %354 = vmatpush1.msra.mxu0 %v80
    %355 = vmatprep.subr.mxu0 0.0
    %356 = vmatpush1.msra.mxu0 0.0
    %357 = vmatprep.subr.mxu0 0.0
    %358 = vmatpush1.msra.mxu0 0.0
    %359 = vmatprep.subr.mxu0 0.0
    %360 = vmatpush1.msra.mxu0 0.0
    %361 = vmatprep.subr.mxu0 0.0
    %362 = vmatpush1.msra.mxu0 0.0
    %363 = vmatprep.subr.mxu0 0.0
    %364 = vmatpush1.msra.mxu0 0.0
    %365 = vmatprep.subr.mxu0 0.0
    %366 = vmatpush1.msra.mxu0 0.0
    %367 = vmatprep.subr.mxu0 0.0
    %368 = vmatpush1.msra.mxu0 0.0
    %369 = vmatprep.subr.mxu0 0.0
    %370 = vmatpush1.msra.mxu0 0.0
    %371 = vmatprep.subr.mxu0 0.0
    %372 = vmatpush1.msra.mxu0 0.0
    %373 = vmatprep.subr.mxu0 0.0
    %374 = vmatpush1.msra.mxu0 0.0
    %375 = vmatprep.subr.mxu0 0.0
    %376 = vmatpush1.msra.mxu0 0.0
    %377 = vmatprep.subr.mxu0 0.0
    %378 = vmatpush1.msra.mxu0 0.0
    %379 = vmatprep.subr.mxu0 0.0
    %380 = vmatpush1.msra.mxu0 0.0
    %381 = vmatprep.subr.mxu0 0.0
    %382 = vmatpush1.msra.mxu0 0.0
    %383 = vmatprep.subr.mxu0 0.0
    %384 = vmatpush1.msra.mxu0 0.0
    %385 = vmatprep.subr.mxu0 0.0
    %386 = vmatpush1.msra.mxu0 0.0
    %387 = vmatprep.subr.mxu0 0.0
    %388 = vmatpush1.msra.mxu0 0.0
    %389 = vmatprep.subr.mxu0 0.0
    %390 = vmatpush1.msra.mxu0 0.0
    %391 = vmatprep.subr.mxu0 0.0
    %392 = vmatpush1.msra.mxu0 0.0
    %393 = vmatprep.subr.mxu0 0.0
    %394 = vmatpush1.msra.mxu0 0.0
    %395 = vmatprep.subr.mxu0 0.0
    %396 = vmatpush1.msra.mxu0 0.0
    %397 = vmatprep.subr.mxu0 0.0
    %398 = vmatpush1.msra.mxu0 0.0
    %399 = vmatprep.subr.mxu0 0.0
    %400 = vmatpush1.msra.mxu0 0.0
    %401 = vmatprep.subr.mxu0 0.0
    %402 = vmatpush1.msra.mxu0 0.0
    %403 = vmatprep.subr.mxu0 0.0
    %404 = vmatpush1.msra.mxu0 0.0
    %405 = vmatprep.subr.mxu0 0.0
    %406 = vmatpush1.msra.mxu0 0.0
    %407 = vmatprep.subr.mxu0 0.0
    %408 = vmatpush1.msra.mxu0 0.0
    %409 = vmatprep.subr.mxu0 0.0
    %410 = vmatpush1.msra.mxu0 0.0
    %411 = vmatprep.mubr.f32.mxu0 0.0
    %412 = vmatmul.mubr.f32.gmra.mrb[0].mxu0 %v342
    %v413 = vpop.f32.mrb[0].mxu0
    %v414 = vadd.f32 0.0, %v413
    %v415 = vpop.f32.mrb[0].mxu0
    %416 = vmatprep.mubr.f32.mxu0 0.0
    %417 = vmatmul.mubr.f32.gmra.mrb[0].mxu0 %v345
    %v418 = vpop.f32.mrb[0].mxu0
    %v419 = vadd.f32 0.0, %v418
    %v420 = vpop.f32.mrb[0].mxu0
    %421 = vdwg.mxu0
    %v423 = vsel %vm97, %v57, 0
    %v426 = vsel %vm97, %v58, 0
    %428 = vmatprep.subr.mxu0 0.0
    %429 = vmatpush1.msra.mxu0 %v81
    %430 = vmatprep.subr.mxu0 0.0
    %431 = vmatpush1.msra.mxu0 %v82
    %432 = vmatprep.subr.mxu0 0.0
    %433 = vmatpush1.msra.mxu0 %v83
    %434 = vmatprep.subr.mxu0 0.0
    %435 = vmatpush1.msra.mxu0 %v84
    %436 = vmatprep.subr.mxu0 0.0
    %437 = vmatpush1.msra.mxu0 0.0
    %438 = vmatprep.subr.mxu0 0.0
    %439 = vmatpush1.msra.mxu0 0.0
    %440 = vmatprep.subr.mxu0 0.0
    %441 = vmatpush1.msra.mxu0 0.0
    %442 = vmatprep.subr.mxu0 0.0
    %443 = vmatpush1.msra.mxu0 0.0
    %444 = vmatprep.subr.mxu0 0.0
    %445 = vmatpush1.msra.mxu0 0.0
    %446 = vmatprep.subr.mxu0 0.0
    %447 = vmatpush1.msra.mxu0 0.0
    %448 = vmatprep.subr.mxu0 0.0
    %449 = vmatpush1.msra.mxu0 0.0
    %450 = vmatprep.subr.mxu0 0.0
    %451 = vmatpush1.msra.mxu0 0.0
    %452 = vmatprep.subr.mxu0 0.0
    %453 = vmatpush1.msra.mxu0 0.0
    %454 = vmatprep.subr.mxu0 0.0
    %455 = vmatpush1.msra.mxu0 0.0
    %456 = vmatprep.subr.mxu0 0.0
    %457 = vmatpush1.msra.mxu0 0.0
    %458 = vmatprep.subr.mxu0 0.0
    %459 = vmatpush1.msra.mxu0 0.0
    %460 = vmatprep.subr.mxu0 0.0
    %461 = vmatpush1.msra.mxu0 0.0
    %462 = vmatprep.subr.mxu0 0.0
    %463 = vmatpush1.msra.mxu0 0.0
    %464 = vmatprep.subr.mxu0 0.0
    %465 = vmatpush1.msra.mxu0 0.0
    %466 = vmatprep.subr.mxu0 0.0
    %467 = vmatpush1.msra.mxu0 0.0
    %468 = vmatprep.subr.mxu0 0.0
    %469 = vmatpush1.msra.mxu0 0.0
    %470 = vmatprep.subr.mxu0 0.0
    %471 = vmatpush1.msra.mxu0 0.0
    %472 = vmatprep.subr.mxu0 0.0
    %473 = vmatpush1.msra.mxu0 0.0
    %474 = vmatprep.subr.mxu0 0.0
    %475 = vmatpush1.msra.mxu0 0.0
    %476 = vmatprep.subr.mxu0 0.0
    %477 = vmatpush1.msra.mxu0 0.0
    %478 = vmatprep.subr.mxu0 0.0
    %479 = vmatpush1.msra.mxu0 0.0
    %480 = vmatprep.subr.mxu0 0.0
    %481 = vmatpush1.msra.mxu0 0.0
    %482 = vmatprep.subr.mxu0 0.0
    %483 = vmatpush1.msra.mxu0 0.0
    %484 = vmatprep.subr.mxu0 0.0
    %485 = vmatpush1.msra.mxu0 0.0
    %486 = vmatprep.subr.mxu0 0.0
    %487 = vmatpush1.msra.mxu0 0.0
    %488 = vmatprep.subr.mxu0 0.0
    %489 = vmatpush1.msra.mxu0 0.0
    %490 = vmatprep.subr.mxu0 0.0
    %491 = vmatpush1.msra.mxu0 0.0
    %492 = vmatprep.mubr.f32.mxu0 0.0
    %493 = vmatmul.mubr.f32.gmra.mrb[0].mxu0 %v423
    %v494 = vpop.f32.mrb[0].mxu0
    %v495 = vadd.f32 0.0, %v494
    %v496 = vpop.f32.mrb[0].mxu0
    %497 = vmatprep.mubr.f32.mxu0 0.0
    %498 = vmatmul.mubr.f32.gmra.mrb[0].mxu0 %v426
    %v499 = vpop.f32.mrb[0].mxu0
    %v500 = vadd.f32 0.0, %v499
    %v501 = vpop.f32.mrb[0].mxu0
    %502 = vdwg.mxu0
    %v504 = vsel %vm97, %v59, 0
    %v507 = vsel %vm97, %v60, 0
    %509 = vmatprep.subr.mxu0 0.0
    %510 = vmatpush1.msra.mxu0 %v85
    %511 = vmatprep.subr.mxu0 0.0
    %512 = vmatpush1.msra.mxu0 %v86
    %513 = vmatprep.subr.mxu0 0.0
    %514 = vmatpush1.msra.mxu0 %v87
    %515 = vmatprep.subr.mxu0 0.0
    %516 = vmatpush1.msra.mxu0 %v88
    %517 = vmatprep.subr.mxu0 0.0
    %518 = vmatpush1.msra.mxu0 0.0
    %519 = vmatprep.subr.mxu0 0.0
    %520 = vmatpush1.msra.mxu0 0.0
    %521 = vmatprep.subr.mxu0 0.0
    %522 = vmatpush1.msra.mxu0 0.0
    %523 = vmatprep.subr.mxu0 0.0
    %524 = vmatpush1.msra.mxu0 0.0
    %525 = vmatprep.subr.mxu0 0.0
    %526 = vmatpush1.msra.mxu0 0.0
    %527 = vmatprep.subr.mxu0 0.0
    %528 = vmatpush1.msra.mxu0 0.0
    %529 = vmatprep.subr.mxu0 0.0
    %530 = vmatpush1.msra.mxu0 0.0
    %531 = vmatprep.subr.mxu0 0.0
    %532 = vmatpush1.msra.mxu0 0.0
    %533 = vmatprep.subr.mxu0 0.0
    %534 = vmatpush1.msra.mxu0 0.0
    %535 = vmatprep.subr.mxu0 0.0
    %536 = vmatpush1.msra.mxu0 0.0
    %537 = vmatprep.subr.mxu0 0.0
    %538 = vmatpush1.msra.mxu0 0.0
    %539 = vmatprep.subr.mxu0 0.0
    %540 = vmatpush1.msra.mxu0 0.0
    %541 = vmatprep.subr.mxu0 0.0
    %542 = vmatpush1.msra.mxu0 0.0
    %543 = vmatprep.subr.mxu0 0.0
    %544 = vmatpush1.msra.mxu0 0.0
    %545 = vmatprep.subr.mxu0 0.0
    %546 = vmatpush1.msra.mxu0 0.0
    %547 = vmatprep.subr.mxu0 0.0
    %548 = vmatpush1.msra.mxu0 0.0
    %549 = vmatprep.subr.mxu0 0.0
    %550 = vmatpush1.msra.mxu0 0.0
    %551 = vmatprep.subr.mxu0 0.0
    %552 = vmatpush1.msra.mxu0 0.0
    %553 = vmatprep.subr.mxu0 0.0
    %554 = vmatpush1.msra.mxu0 0.0
    %555 = vmatprep.subr.mxu0 0.0
    %556 = vmatpush1.msra.mxu0 0.0
    %557 = vmatprep.subr.mxu0 0.0
    %558 = vmatpush1.msra.mxu0 0.0
    %559 = vmatprep.subr.mxu0 0.0
    %560 = vmatpush1.msra.mxu0 0.0
    %561 = vmatprep.subr.mxu0 0.0
    %562 = vmatpush1.msra.mxu0 0.0
    %563 = vmatprep.subr.mxu0 0.0
    %564 = vmatpush1.msra.mxu0 0.0
    %565 = vmatprep.subr.mxu0 0.0
    %566 = vmatpush1.msra.mxu0 0.0
    %567 = vmatprep.subr.mxu0 0.0
    %568 = vmatpush1.msra.mxu0 0.0
    %569 = vmatprep.subr.mxu0 0.0
    %570 = vmatpush1.msra.mxu0 0.0
    %571 = vmatprep.subr.mxu0 0.0
    %572 = vmatpush1.msra.mxu0 0.0
    %573 = vmatprep.mubr.f32.mxu0 0.0
    %574 = vmatmul.mubr.f32.gmra.mrb[0].mxu0 %v504
    %v575 = vpop.f32.mrb[0].mxu0
    %v576 = vadd.f32 0.0, %v575
    %v577 = vpop.f32.mrb[0].mxu0
    %578 = vmatprep.mubr.f32.mxu0 0.0
    %579 = vmatmul.mubr.f32.gmra.mrb[0].mxu0 %v507
    %v580 = vpop.f32.mrb[0].mxu0
    %v581 = vadd.f32 0.0, %v580
    %v582 = vpop.f32.mrb[0].mxu0
    %583 = vdwg.mxu0
    %v585 = vsel %vm97, %v61, 0
    %v588 = vsel %vm97, %v62, 0
    %590 = vmatprep.subr.mxu0 0.0
    %591 = vmatpush1.msra.mxu0 %v89
    %592 = vmatprep.subr.mxu0 0.0
    %593 = vmatpush1.msra.mxu0 %v90
    %594 = vmatprep.subr.mxu0 0.0
    %595 = vmatpush1.msra.mxu0 %v91
    %596 = vmatprep.subr.mxu0 0.0
    %597 = vmatpush1.msra.mxu0 %v92
    %598 = vmatprep.subr.mxu0 0.0
    %599 = vmatpush1.msra.mxu0 0.0
    %600 = vmatprep.subr.mxu0 0.0
    %601 = vmatpush1.msra.mxu0 0.0
    %602 = vmatprep.subr.mxu0 0.0
    %603 = vmatpush1.msra.mxu0 0.0
    %604 = vmatprep.subr.mxu0 0.0
    %605 = vmatpush1.msra.mxu0 0.0
    %606 = vmatprep.subr.mxu0 0.0
    %607 = vmatpush1.msra.mxu0 0.0
    %608 = vmatprep.subr.mxu0 0.0
    %609 = vmatpush1.msra.mxu0 0.0
    %610 = vmatprep.subr.mxu0 0.0
    %611 = vmatpush1.msra.mxu0 0.0
    %612 = vmatprep.subr.mxu0 0.0
    %613 = vmatpush1.msra.mxu0 0.0
    %614 = vmatprep.subr.mxu0 0.0
    %615 = vmatpush1.msra.mxu0 0.0
    %616 = vmatprep.subr.mxu0 0.0
    %617 = vmatpush1.msra.mxu0 0.0
    %618 = vmatprep.subr.mxu0 0.0
    %619 = vmatpush1.msra.mxu0 0.0
    %620 = vmatprep.subr.mxu0 0.0
    %621 = vmatpush1.msra.mxu0 0.0
    %622 = vmatprep.subr.mxu0 0.0
    %623 = vmatpush1.msra.mxu0 0.0
    %624 = vmatprep.subr.mxu0 0.0
    %625 = vmatpush1.msra.mxu0 0.0
    %626 = vmatprep.subr.mxu0 0.0
    %627 = vmatpush1.msra.mxu0 0.0
    %628 = vmatprep.subr.mxu0 0.0
    %629 = vmatpush1.msra.mxu0 0.0
    %630 = vmatprep.subr.mxu0 0.0
    %631 = vmatpush1.msra.mxu0 0.0
    %632 = vmatprep.subr.mxu0 0.0
    %633 = vmatpush1.msra.mxu0 0.0
    %634 = vmatprep.subr.mxu0 0.0
    %635 = vmatpush1.msra.mxu0 0.0
    %636 = vmatprep.subr.mxu0 0.0
    %637 = vmatpush1.msra.mxu0 0.0
    %638 = vmatprep.subr.mxu0 0.0
    %639 = vmatpush1.msra.mxu0 0.0
    %640 = vmatprep.subr.mxu0 0.0
    %641 = vmatpush1.msra.mxu0 0.0
    %642 = vmatprep.subr.mxu0 0.0
    %643 = vmatpush1.msra.mxu0 0.0
    %644 = vmatprep.subr.mxu0 0.0
    %645 = vmatpush1.msra.mxu0 0.0
    %646 = vmatprep.subr.mxu0 0.0
    %647 = vmatpush1.msra.mxu0 0.0
    %648 = vmatprep.subr.mxu0 0.0
    %649 = vmatpush1.msra.mxu0 0.0
    %650 = vmatprep.subr.mxu0 0.0
    %651 = vmatpush1.msra.mxu0 0.0
    %652 = vmatprep.subr.mxu0 0.0
    %653 = vmatpush1.msra.mxu0 0.0
    %654 = vmatprep.mubr.f32.mxu0 0.0
    %655 = vmatmul.mubr.f32.gmra.mrb[0].mxu0 %v585
    %v656 = vpop.f32.mrb[0].mxu0
    %v657 = vadd.f32 0.0, %v656
    %v658 = vpop.f32.mrb[0].mxu0
    %659 = vmatprep.mubr.f32.mxu0 0.0
    %660 = vmatmul.mubr.f32.gmra.mrb[0].mxu0 %v588
    %v661 = vpop.f32.mrb[0].mxu0
    %v662 = vadd.f32 0.0, %v661
    %v663 = vpop.f32.mrb[0].mxu0
    %664 = vdwg.mxu0
    %v666 = vsel %vm97, %v63, 0
    %v669 = vsel %vm97, %v64, 0
    %671 = vmatprep.subr.mxu0 0.0
    %672 = vmatpush1.msra.mxu0 %v93
    %673 = vmatprep.subr.mxu0 0.0
    %674 = vmatpush1.msra.mxu0 %v94
    %675 = vmatprep.subr.mxu0 0.0
    %676 = vmatpush1.msra.mxu0 %v95
    %677 = vmatprep.subr.mxu0 0.0
    %678 = vmatpush1.msra.mxu0 %v96
    %679 = vmatprep.subr.mxu0 0.0
    %680 = vmatpush1.msra.mxu0 0.0
    %681 = vmatprep.subr.mxu0 0.0
    %682 = vmatpush1.msra.mxu0 0.0
    %683 = vmatprep.subr.mxu0 0.0
    %684 = vmatpush1.msra.mxu0 0.0
    %685 = vmatprep.subr.mxu0 0.0
    %686 = vmatpush1.msra.mxu0 0.0
    %687 = vmatprep.subr.mxu0 0.0
    %688 = vmatpush1.msra.mxu0 0.0
    %689 = vmatprep.subr.mxu0 0.0
    %690 = vmatpush1.msra.mxu0 0.0
    %691 = vmatprep.subr.mxu0 0.0
    %692 = vmatpush1.msra.mxu0 0.0
    %693 = vmatprep.subr.mxu0 0.0
    %694 = vmatpush1.msra.mxu0 0.0
    %695 = vmatprep.subr.mxu0 0.0
    %696 = vmatpush1.msra.mxu0 0.0
    %697 = vmatprep.subr.mxu0 0.0
    %698 = vmatpush1.msra.mxu0 0.0
    %699 = vmatprep.subr.mxu0 0.0
    %700 = vmatpush1.msra.mxu0 0.0
    %701 = vmatprep.subr.mxu0 0.0
    %702 = vmatpush1.msra.mxu0 0.0
    %703 = vmatprep.subr.mxu0 0.0
    %704 = vmatpush1.msra.mxu0 0.0
    %705 = vmatprep.subr.mxu0 0.0
    %706 = vmatpush1.msra.mxu0 0.0
    %707 = vmatprep.subr.mxu0 0.0
    %708 = vmatpush1.msra.mxu0 0.0
    %709 = vmatprep.subr.mxu0 0.0
    %710 = vmatpush1.msra.mxu0 0.0
    %711 = vmatprep.subr.mxu0 0.0
    %712 = vmatpush1.msra.mxu0 0.0
    %713 = vmatprep.subr.mxu0 0.0
    %714 = vmatpush1.msra.mxu0 0.0
    %715 = vmatprep.subr.mxu0 0.0
    %716 = vmatpush1.msra.mxu0 0.0
    %717 = vmatprep.subr.mxu0 0.0
    %718 = vmatpush1.msra.mxu0 0.0
    %719 = vmatprep.subr.mxu0 0.0
    %720 = vmatpush1.msra.mxu0 0.0
    %721 = vmatprep.subr.mxu0 0.0
    %722 = vmatpush1.msra.mxu0 0.0
    %723 = vmatprep.subr.mxu0 0.0
    %724 = vmatpush1.msra.mxu0 0.0
    %725 = vmatprep.subr.mxu0 0.0
    %726 = vmatpush1.msra.mxu0 0.0
    %727 = vmatprep.subr.mxu0 0.0
    %728 = vmatpush1.msra.mxu0 0.0
    %729 = vmatprep.subr.mxu0 0.0
    %730 = vmatpush1.msra.mxu0 0.0
    %731 = vmatprep.subr.mxu0 0.0
    %732 = vmatpush1.msra.mxu0 0.0
    %733 = vmatprep.subr.mxu0 0.0
    %734 = vmatpush1.msra.mxu0 0.0
    %735 = vmatprep.mubr.f32.mxu0 0.0
    %736 = vmatmul.mubr.f32.gmra.mrb[0].mxu0 %v666
    %v737 = vpop.f32.mrb[0].mxu0
    %v738 = vadd.f32 0.0, %v737
    %v739 = vpop.f32.mrb[0].mxu0
    %740 = vmatprep.mubr.f32.mxu0 0.0
    %741 = vmatmul.mubr.f32.gmra.mrb[0].mxu0 %v669
    %v742 = vpop.f32.mrb[0].mxu0
    %v743 = vadd.f32 0.0, %v742
    %v744 = vpop.f32.mrb[0].mxu0
    %745 = vdwg.mxu0
    %v746 = vadd.f32 %v33, %v171
    %v747 = vadd.f32 %v34, %v176
    %v748 = vadd.f32 %v35, %v252
    %v749 = vadd.f32 %v36, %v257
    %v750 = vadd.f32 %v37, %v333
    %v751 = vadd.f32 %v38, %v338
    %v752 = vadd.f32 %v39, %v414
    %v753 = vadd.f32 %v40, %v419
    %v754 = vadd.f32 %v41, %v495
    %v755 = vadd.f32 %v42, %v500
    %v756 = vadd.f32 %v43, %v576
    %v757 = vadd.f32 %v44, %v581
    %v758 = vadd.f32 %v45, %v657
    %v759 = vadd.f32 %v46, %v662
    %v760 = vadd.f32 %v47, %v738
    %v761 = vadd.f32 %v48, %v743
    %vm762 = vcmask 130048
    %763 = vst.msk [vmem:[#allocation2] sm:$0xff] %vm762, %v746
    %764 = vst.msk [vmem:[#allocation2 + $0x8] sm:$0xff] %vm762, %v747
    %765 = vst.msk [vmem:[#allocation2 + $0x10] sm:$0xff] %vm762, %v748
    %766 = vst.msk [vmem:[#allocation2 + $0x18] sm:$0xff] %vm762, %v749
    %767 = vst.msk [vmem:[#allocation2 + $0x20] sm:$0xff] %vm762, %v750
    %768 = vst.msk [vmem:[#allocation2 + $0x28] sm:$0xff] %vm762, %v751
    %769 = vst.msk [vmem:[#allocation2 + $0x30] sm:$0xff] %vm762, %v752
    %770 = vst.msk [vmem:[#allocation2 + $0x38] sm:$0xff] %vm762, %v753
    %771 = vst.msk [vmem:[#allocation2 + $0x40] sm:$0xff] %vm762, %v754
    %772 = vst.msk [vmem:[#allocation2 + $0x48] sm:$0xff] %vm762, %v755
    %773 = vst.msk [vmem:[#allocation2 + $0x50] sm:$0xff] %vm762, %v756
    %774 = vst.msk [vmem:[#allocation2 + $0x58] sm:$0xff] %vm762, %v757
    %775 = vst.msk [vmem:[#allocation2 + $0x60] sm:$0xff] %vm762, %v758
    %776 = vst.msk [vmem:[#allocation2 + $0x68] sm:$0xff] %vm762, %v759
    %777 = vst.msk [vmem:[#allocation2 + $0x70] sm:$0xff] %vm762, %v760
    %778 = vst.msk [vmem:[#allocation2 + $0x78] sm:$0xff] %vm762, %v761
    // Predicated region
    $region14: #{pallas_matmul.1} parent=1 // pred_check
      %p779 = pneg %p12
    $region15: #{pallas_matmul.1} parent=1 // pred_check_branch
      %781 = sbr.rel (%p779) target = $region17
    $region16: #{pallas_matmul.1} parent=1 // pred_region
      %v782 = vld [vmem:[#allocation2] sm:$0xff]
      %v783 = vld [vmem:[#allocation2 + $0x8] sm:$0xff]
      %v784 = vld [vmem:[#allocation2 + $0x10] sm:$0xff]
      %v785 = vld [vmem:[#allocation2 + $0x18] sm:$0xff]
      %v786 = vld [vmem:[#allocation2 + $0x20] sm:$0xff]
      %v787 = vld [vmem:[#allocation2 + $0x28] sm:$0xff]
      %v788 = vld [vmem:[#allocation2 + $0x30] sm:$0xff]
      %v789 = vld [vmem:[#allocation2 + $0x38] sm:$0xff]
      %v790 = vld [vmem:[#allocation2 + $0x40] sm:$0xff]
      %v791 = vld [vmem:[#allocation2 + $0x48] sm:$0xff]
      %v792 = vld [vmem:[#allocation2 + $0x50] sm:$0xff]
      %v793 = vld [vmem:[#allocation2 + $0x58] sm:$0xff]
      %v794 = vld [vmem:[#allocation2 + $0x60] sm:$0xff]
      %v795 = vld [vmem:[#allocation2 + $0x68] sm:$0xff]
      %v796 = vld [vmem:[#allocation2 + $0x70] sm:$0xff]
      %v797 = vld [vmem:[#allocation2 + $0x78] sm:$0xff]
      %798 = vst.msk [vmem:[#allocation3] sm:$0xff] %vm762, %v782
      %799 = vst.msk [vmem:[#allocation3 + $0x8] sm:$0xff] %vm762, %v783
      %800 = vst.msk [vmem:[#allocation3 + $0x10] sm:$0xff] %vm762, %v784
      %801 = vst.msk [vmem:[#allocation3 + $0x18] sm:$0xff] %vm762, %v785
      %802 = vst.msk [vmem:[#allocation3 + $0x20] sm:$0xff] %vm762, %v786
      %803 = vst.msk [vmem:[#allocation3 + $0x28] sm:$0xff] %vm762, %v787
      %804 = vst.msk [vmem:[#allocation3 + $0x30] sm:$0xff] %vm762, %v788
      %805 = vst.msk [vmem:[#allocation3 + $0x38] sm:$0xff] %vm762, %v789
      %806 = vst.msk [vmem:[#allocation3 + $0x40] sm:$0xff] %vm762, %v790
      %807 = vst.msk [vmem:[#allocation3 + $0x48] sm:$0xff] %vm762, %v791
      %808 = vst.msk [vmem:[#allocation3 + $0x50] sm:$0xff] %vm762, %v792
      %809 = vst.msk [vmem:[#allocation3 + $0x58] sm:$0xff] %vm762, %v793
      %810 = vst.msk [vmem:[#allocation3 + $0x60] sm:$0xff] %vm762, %v794
      %811 = vst.msk [vmem:[#allocation3 + $0x68] sm:$0xff] %vm762, %v795
      %812 = vst.msk [vmem:[#allocation3 + $0x70] sm:$0xff] %vm762, %v796
      %813 = vst.msk [vmem:[#allocation3 + $0x78] sm:$0xff] %vm762, %v797
    $region17: #{pallas_matmul.1} parent=1 // pred_fallthru
      _
    // Predicated region
    $region18: #{pallas_matmul.1} parent=1 // pred_check
      _
    $region19: #{pallas_matmul.1} parent=1 // pred_check_branch
      %815 = sbr.rel (0) target = $region21
    $region20: #{pallas_matmul.1} parent=1 // pred_region
      %s817 = ssub.s32 2048, 2048
      %818 = vsyncadd [#allocation4], %s817
      %s819 = sshll.u32 [#allocation3], 4
      %s820 = int_to_ptr.vmem [resolvable:$true] %s819
      %825 = dma.vmem_to_hbm [thread:$0]  %s820, 2048, %s2, [#allocation4], 128, 128, 8
    $region21: #{pallas_matmul.1} parent=1 // pred_fallthru
      _
    // Predicated region
    $region22: #{pallas_matmul.1} parent=1 // pred_check
      _
    $region23: #{pallas_matmul.1} parent=1 // pred_check_branch
      %827 = sbr.rel (0) target = $region25
    $region24: #{pallas_matmul.1} parent=1 // pred_region
      %828 = dma.done [#allocation4], 2048
    $region25: #{pallas_matmul.1} parent=1 // pred_fallthru
      _
    %829 = vsyncpa [#allocation4], 1

</llo_original>
